<compile_context>
chip_gen: v7x
topology: tpu7x:2x2x1
jax: 0.10.0
libtpu: 0.0.40
codegen_flags: <defaults>
</compile_context>

<pallas_src>
import functools

import jax
import jax.numpy as jnp
from jax.experimental import pallas as pl
from jax.experimental.pallas import tpu as pltpu


def _pw_linear_kernel(c_ref, d_ref, x_ref, o_ref, *, nodes, d0, scale):
    """Evaluate the piecewise-linear LUT on one (block_rows, lanes) tile.

    c_ref / d_ref : SMEM [nodes-1] f32 per-segment affine coefficients
                    (scalar prefetch);  y = c[k] * s + d[k] on segment k,
                    with s in node-index space.
    x_ref / o_ref : VMEM tiles.
    """
    # Hoist all scalar SMEM reads above the vector select chain.
    c = [c_ref[k] for k in range(nodes - 1)]
    d = [d_ref[k] for k in range(nodes - 1)]

    x = x_ref[...].astype(jnp.float32)
    s = (x - d0) * scale                       # node-index space, computed once

    # Select coefficients (2 wheres / segment), then one final multiply-add.
    # Segment 0 also covers s < 0 (linear extrapolation, matches the clamp in
    # the reference); the last segment covers s >= nodes-2.
    c_sel = c[0]
    d_sel = d[0]
    for k in range(1, nodes - 1):              # ordered threshold selects
        mask = s >= float(k)
        c_sel = jnp.where(mask, c[k], c_sel)
        d_sel = jnp.where(mask, d[k], d_sel)
    o_ref[...] = (c_sel * s + d_sel).astype(o_ref.dtype)


def _pw_linear_jnp(x, value_f32, d0, scale, nodes):
    """Reference / tiny-tail path (gather-based, plain jnp)."""
    s = (x.astype(jnp.float32) - d0) * scale
    idx = jnp.clip(jnp.floor(s), 0, nodes - 2).astype(jnp.int32)
    f = s - idx
    return value_f32[idx] * (1.0 - f) + value_f32[idx + 1] * f


def _device_kind():
    try:
        return jax.devices()[0].device_kind.lower()
    except Exception:  # pragma: no cover
        return ""


def linear_layer(x, value, domain=(0.0, 1.0)):
    """Pallas TPU implementation of candlelight's piecewise-linear layer."""
    nodes = int(value.shape[0])
    if nodes < 2:
        raise ValueError("nodes must be >= 2")
    d0, d1 = float(domain[0]), float(domain[1])
    if d0 == d1:
        raise ValueError("domain must have nonzero width")
    scale = float(nodes - 1) / (d1 - d0)

    value_f32 = value.astype(jnp.float32)
    # Per-segment affine coefficients in node-index space: y = c[k]*s + d[k].
    seg_idx = jnp.arange(nodes - 1, dtype=jnp.float32)
    c = value_f32[1:] - value_f32[:-1]
    d = value_f32[:-1] - c * seg_idx

    orig_shape = x.shape
    # Keep bf16 inputs in bf16 in HBM (halves read traffic); compute in f32.
    in_dtype = jnp.bfloat16 if x.dtype == jnp.bfloat16 else jnp.float32
    flat = x.reshape(-1).astype(in_dtype)
    n = flat.shape[0]

    n_tail = n % 128
    n_bulk = n - n_tail

    out_parts = []
    if n_bulk > 0:
        # Lane-dense layout: widest lane count (multiple of 128) dividing n_bulk.
        lanes = 128
        for cand in (1024, 512, 256, 128):
            if n_bulk % cand == 0:
                lanes = cand
                break
        slab = flat[:n_bulk].reshape(-1, lanes)
        rows = slab.shape[0]

        kind = _device_kind()
        multi_tc = "v7" in kind                      # 2 TensorCores / chip
        big_blocks = ("v6" in kind) or ("v7" in kind)
        # ~4 MiB per block buffer on v6e/v7x (16 MiB live double-buffered in+out,
        # under the 32 MiB default scoped VMEM); ~2 MiB on v5e/unknown (8 MiB live,
        # under v5e's 16 MiB default scoped limit).
        block_bytes = (4 if big_blocks else 2) * 1024 * 1024
        target_rows = max(8, block_bytes // (4 * lanes))

        if rows <= target_rows:
            if multi_tc and rows > 8:
                # Split so both v7x TensorCores get work.
                block_rows = min(rows, ((pl.cdiv(rows, 2) + 7) // 8) * 8)
            else:
                block_rows = rows            # single grid step on 1-TC chips
        else:
            block_rows = target_rows

        grid_steps = pl.cdiv(rows, block_rows)
        if multi_tc and grid_steps > 1 and grid_steps % 2 == 1:
            # Prefer an even step count so the two TensorCores stay balanced.
            cand_rows = ((pl.cdiv(rows, grid_steps + 1) + 7) // 8) * 8
            if 8 <= cand_rows < rows:
                block_rows = cand_rows
                grid_steps = pl.cdiv(rows, block_rows)

        kernel = functools.partial(_pw_linear_kernel, nodes=nodes, d0=d0, scale=scale)

        out_slab = pl.pallas_call(
            kernel,
            out_shape=jax.ShapeDtypeStruct((rows, lanes), jnp.float32),
            grid_spec=pltpu.PrefetchScalarGridSpec(
                num_scalar_prefetch=2,       # c, d -> SMEM once, before the grid
                grid=(grid_steps,),
                in_specs=[
                    pl.BlockSpec((block_rows, lanes), lambda i, c_r, d_r: (i, 0)),
                ],
                out_specs=pl.BlockSpec((block_rows, lanes), lambda i, c_r, d_r: (i, 0)),
            ),
            compiler_params=pltpu.CompilerParams(
                dimension_semantics=("parallel",),
            ),
        )(c, d, slab)
        out_parts.append(out_slab.reshape(-1))

    if n_tail > 0:
        # Tiny (<128 element) ragged tail: plain jnp; avoids a full-tensor pad copy.
        out_parts.append(_pw_linear_jnp(flat[n_bulk:], value_f32, d0, scale, nodes))

    out_flat = out_parts[0] if len(out_parts) == 1 else jnp.concatenate(out_parts)
    return out_flat.reshape(orig_shape)


if __name__ == "__main__":
    nodes = 8
    domain = (0.0, 1.0)

    key = jax.random.PRNGKey(0)
    k_val, k_x = jax.random.split(key)

    # Parameter init mirroring the module's __init__ (linspace over the domain),
    # plus a small deterministic perturbation so the LUT is not the identity map.
    base = jnp.linspace(domain[0], domain[1], nodes, dtype=jnp.float32)
    value = base + 0.05 * jax.random.normal(k_val, (nodes,), dtype=jnp.float32)

    # Example input: small NCHW tensor with values spanning the domain.
    x = jax.random.uniform(k_x, (2, 4, 16, 16), dtype=jnp.float32,
                           minval=domain[0], maxval=domain[1])

    y = jax.block_until_ready(linear_layer(x, value, domain))

    y_ref = _pw_linear_jnp(x, value.astype(jnp.float32), float(domain[0]),
                           float(nodes - 1) / (domain[1] - domain[0]), nodes)
    assert y.shape == x.shape and y.dtype == jnp.float32
    assert jnp.allclose(y, y_ref, atol=1e-5, rtol=1e-5), \
        float(jnp.max(jnp.abs(y - y_ref)))

    print("KERNEL_OK")
</pallas_src>

<mosaic_0001>
module attributes {stable_mosaic.version = 11 : i64} {
  func.func @_pw_linear_kernel(%arg0: i32, %arg1: memref<7xf32, #tpu.memory_space<smem>>, %arg2: memref<7xf32, #tpu.memory_space<smem>>, %arg3: memref<2x1024xf32, #tpu.memory_space<vmem>>, %arg4: memref<2x1024xf32, #tpu.memory_space<vmem>>) attributes {dimension_semantics = [#tpu.dimension_semantics<parallel>], iteration_bounds = array<i64: 1>, scalar_prefetch = 2 : i64, scratch_operands = 0 : i64, tpu.core_type = #tpu.core_type<tc>, window_params = [{transform_indices = @transform_0, window_bounds = array<i64: 2, 1024>}, {transform_indices = @transform_1, window_bounds = array<i64: 2, 1024>}]} {
    %c0 = arith.constant 0 : index
    %0 = memref.load %arg1[%c0] : memref<7xf32, #tpu.memory_space<smem>>
    %c1 = arith.constant 1 : index
    %1 = memref.load %arg1[%c1] : memref<7xf32, #tpu.memory_space<smem>>
    %c2 = arith.constant 2 : index
    %2 = memref.load %arg1[%c2] : memref<7xf32, #tpu.memory_space<smem>>
    %c3 = arith.constant 3 : index
    %3 = memref.load %arg1[%c3] : memref<7xf32, #tpu.memory_space<smem>>
    %c4 = arith.constant 4 : index
    %4 = memref.load %arg1[%c4] : memref<7xf32, #tpu.memory_space<smem>>
    %c5 = arith.constant 5 : index
    %5 = memref.load %arg1[%c5] : memref<7xf32, #tpu.memory_space<smem>>
    %c6 = arith.constant 6 : index
    %6 = memref.load %arg1[%c6] : memref<7xf32, #tpu.memory_space<smem>>
    %c0_0 = arith.constant 0 : index
    %7 = memref.load %arg2[%c0_0] : memref<7xf32, #tpu.memory_space<smem>>
    %c1_1 = arith.constant 1 : index
    %8 = memref.load %arg2[%c1_1] : memref<7xf32, #tpu.memory_space<smem>>
    %c2_2 = arith.constant 2 : index
    %9 = memref.load %arg2[%c2_2] : memref<7xf32, #tpu.memory_space<smem>>
    %c3_3 = arith.constant 3 : index
    %10 = memref.load %arg2[%c3_3] : memref<7xf32, #tpu.memory_space<smem>>
    %c4_4 = arith.constant 4 : index
    %11 = memref.load %arg2[%c4_4] : memref<7xf32, #tpu.memory_space<smem>>
    %c5_5 = arith.constant 5 : index
    %12 = memref.load %arg2[%c5_5] : memref<7xf32, #tpu.memory_space<smem>>
    %c6_6 = arith.constant 6 : index
    %13 = memref.load %arg2[%c6_6] : memref<7xf32, #tpu.memory_space<smem>>
    %c0_7 = arith.constant 0 : index
    %c0_8 = arith.constant 0 : index
    %14 = vector.load %arg3[%c0_7, %c0_8] : memref<2x1024xf32, #tpu.memory_space<vmem>>, vector<2x1024xf32>
    %cst = arith.constant 0.000000e+00 : f32
    %15 = vector.broadcast %cst : f32 to vector<2x1024xf32>
    %16 = arith.subf %14, %15 : vector<2x1024xf32>
    %cst_9 = arith.constant 7.000000e+00 : f32
    %17 = vector.broadcast %cst_9 : f32 to vector<2x1024xf32>
    %18 = arith.mulf %16, %17 : vector<2x1024xf32>
    %cst_10 = arith.constant 1.000000e+00 : f32
    %19 = vector.broadcast %cst_10 : f32 to vector<2x1024xf32>
    %20 = arith.cmpf oge, %18, %19 : vector<2x1024xf32>
    %21 = vector.broadcast %1 : f32 to vector<2x1024xf32>
    %22 = vector.broadcast %0 : f32 to vector<2x1024xf32>
    %23 = arith.select %20, %21, %22 : vector<2x1024xi1>, vector<2x1024xf32>
    %24 = vector.broadcast %8 : f32 to vector<2x1024xf32>
    %25 = vector.broadcast %7 : f32 to vector<2x1024xf32>
    %26 = arith.select %20, %24, %25 : vector<2x1024xi1>, vector<2x1024xf32>
    %cst_11 = arith.constant 2.000000e+00 : f32
    %27 = vector.broadcast %cst_11 : f32 to vector<2x1024xf32>
    %28 = arith.cmpf oge, %18, %27 : vector<2x1024xf32>
    %29 = vector.broadcast %2 : f32 to vector<2x1024xf32>
    %30 = arith.select %28, %29, %23 : vector<2x1024xi1>, vector<2x1024xf32>
    %31 = vector.broadcast %9 : f32 to vector<2x1024xf32>
    %32 = arith.select %28, %31, %26 : vector<2x1024xi1>, vector<2x1024xf32>
    %cst_12 = arith.constant 3.000000e+00 : f32
    %33 = vector.broadcast %cst_12 : f32 to vector<2x1024xf32>
    %34 = arith.cmpf oge, %18, %33 : vector<2x1024xf32>
    %35 = vector.broadcast %3 : f32 to vector<2x1024xf32>
    %36 = arith.select %34, %35, %30 : vector<2x1024xi1>, vector<2x1024xf32>
    %37 = vector.broadcast %10 : f32 to vector<2x1024xf32>
    %38 = arith.select %34, %37, %32 : vector<2x1024xi1>, vector<2x1024xf32>
    %cst_13 = arith.constant 4.000000e+00 : f32
    %39 = vector.broadcast %cst_13 : f32 to vector<2x1024xf32>
    %40 = arith.cmpf oge, %18, %39 : vector<2x1024xf32>
    %41 = vector.broadcast %4 : f32 to vector<2x1024xf32>
    %42 = arith.select %40, %41, %36 : vector<2x1024xi1>, vector<2x1024xf32>
    %43 = vector.broadcast %11 : f32 to vector<2x1024xf32>
    %44 = arith.select %40, %43, %38 : vector<2x1024xi1>, vector<2x1024xf32>
    %cst_14 = arith.constant 5.000000e+00 : f32
    %45 = vector.broadcast %cst_14 : f32 to vector<2x1024xf32>
    %46 = arith.cmpf oge, %18, %45 : vector<2x1024xf32>
    %47 = vector.broadcast %5 : f32 to vector<2x1024xf32>
    %48 = arith.select %46, %47, %42 : vector<2x1024xi1>, vector<2x1024xf32>
    %49 = vector.broadcast %12 : f32 to vector<2x1024xf32>
    %50 = arith.select %46, %49, %44 : vector<2x1024xi1>, vector<2x1024xf32>
    %cst_15 = arith.constant 6.000000e+00 : f32
    %51 = vector.broadcast %cst_15 : f32 to vector<2x1024xf32>
    %52 = arith.cmpf oge, %18, %51 : vector<2x1024xf32>
    %53 = vector.broadcast %6 : f32 to vector<2x1024xf32>
    %54 = arith.select %52, %53, %48 : vector<2x1024xi1>, vector<2x1024xf32>
    %55 = vector.broadcast %13 : f32 to vector<2x1024xf32>
    %56 = arith.select %52, %55, %50 : vector<2x1024xi1>, vector<2x1024xf32>
    %57 = arith.mulf %54, %18 : vector<2x1024xf32>
    %58 = arith.addf %57, %56 : vector<2x1024xf32>
    %c0_16 = arith.constant 0 : index
    %c0_17 = arith.constant 0 : index
    %59 = vector.load %arg4[%c0_16, %c0_17] : memref<2x1024xf32, #tpu.memory_space<vmem>>, vector<2x1024xf32>
    tpu.vector_store %arg4[%c0_16, %c0_17], %58 {strides = array<i32>} : memref<2x1024xf32, #tpu.memory_space<vmem>>, vector<2x1024xf32>,
    return
  }
  func.func @transform_0(%arg0: i32, %arg1: memref<7xf32, #tpu.memory_space<smem>>, %arg2: memref<7xf32, #tpu.memory_space<smem>>) -> (i32, i32) {
    %c0_i32 = arith.constant 0 : i32
    %c0_i32_0 = arith.constant 0 : i32
    return %arg0, %c0_i32 : i32, i32
  }
  func.func @transform_1(%arg0: i32, %arg1: memref<7xf32, #tpu.memory_space<smem>>, %arg2: memref<7xf32, #tpu.memory_space<smem>>) -> (i32, i32) {
    %c0_i32 = arith.constant 0 : i32
    %c0_i32_0 = arith.constant 0 : i32
    return %arg0, %c0_i32 : i32, i32
  }
}

</mosaic_0001>

<llo_original>
// kernel: tpu_custom_call.1
$region0: #{tpu_custom_call.1}
  #allocation0 [shape = 'u32[]', space=smem, size = 0x4, offset = 0x4, fixed_abs, tag = 'smem constant byte address 0x4 - core index']
  #allocation1 [shape = 'u32[144,128]{1,0:T(1,128)}', space=vmem, size = 0x12000, scoped, tag = 'internal scratch']
  #allocation2 [shape = 's32[1]{0}', space=sflag, size = 0x4, scoped, tag = 'scoped memory for tpu_custom_call.1']
  #allocation3 [shape = 'u8[512]{0}', space=smem, size = 0x200, scoped, tag = 'prefetched SMEM operand 0']
  #allocation4 [shape = 'u8[512]{0}', space=smem, size = 0x200, scoped, tag = 'prefetched SMEM operand 1']
  %s0 = inlined_call_operand.hbm [shape: f32[7], index: 0, kind: input, shape index: {}]
  %s1 = inlined_call_operand.vmem [shape: f32[7], index: 1, kind: input, shape index: {}]
  %s2 = inlined_call_operand.hbm [shape: f32[2,1024], index: 2, kind: input, shape index: {}]
  %s3 = inlined_call_operand.hbm [shape: f32[2,1024], index: 3, kind: output, shape index: {}]
  %s4 = sld [smem:[#allocation0]]
  $region18: #{tpu_custom_call.1} parent=0
    _
  %s6 = ssub.s32 1, %s4
  %s7 = scalar_select 0, %s6, %s4
  %9 = dma.hbm_to_smem %s0, 16, [#allocation3], [#allocation2]
  %s10 = sshll.u32 %s1, 4
  %s11 = int_to_ptr.vmem [resolvable:$true] %s10
  %13 = dma.vmem_to_smem %s11, 16, [#allocation4], [#allocation2]
  %14 = dma.done [#allocation2], 32
  %15 = sfence
  $region1: #{tpu_custom_call.1} parent=0
    #allocation5 [shape = 'u8[8192]{0}', space=vmem, size = 0x2000, scoped, tag = 'input window, operand 2, single buffered']
    #allocation6 [shape = 's32[1]{0}', space=sflag, size = 0x4, scoped, tag = 'scoped memory for tpu_custom_call.1']
    #allocation7 [shape = 's32[1]{0}', space=sflag, size = 0x4, scoped, tag = 'scoped memory for tpu_custom_call.1']
    #allocation8 [shape = 'u8[8192]{0}', space=vmem, size = 0x2000, scoped, tag = 'output window, operand 0, single buffered']
    %16 = vsyncpa [#allocation6], 0
    %17 = vsyncpa [#allocation7], 0
    // Predicated region
    $region2: #{tpu_custom_call.1} parent=1 // pred_check
      _
    $region3: #{tpu_custom_call.1} parent=1 // pred_check_branch
      %19 = sbr.rel (0) target = $region5
    $region4: #{tpu_custom_call.1} parent=1 // pred_region
      %s21 = ssub.s32 256, 256
      %22 = vsyncadd [#allocation6], %s21
      %s24 = sshll.u32 [#allocation5], 4
      %s25 = int_to_ptr.vmem [resolvable:$true] %s24
      %27 = dma.hbm_to_vmem [thread:$0]  %s2, 256, %s25, [#allocation6]
    $region5: #{tpu_custom_call.1} parent=1 // pred_fallthru
      _
    // Predicated region
    $region6: #{tpu_custom_call.1} parent=1 // pred_check
      _
    $region7: #{tpu_custom_call.1} parent=1 // pred_check_branch
      %29 = sbr.rel (0) target = $region9
    $region8: #{tpu_custom_call.1} parent=1 // pred_region
      %30 = dma.done [#allocation6], 256
    $region9: #{tpu_custom_call.1} parent=1 // pred_fallthru
      _
    %s31 = sld [smem:[#allocation3]]
    %s32 = sld [smem:[#allocation3 + $0x1]]
    %s33 = sld [smem:[#allocation3 + $0x2]]
    %s34 = sld [smem:[#allocation3 + $0x3]]
    %s35 = sld [smem:[#allocation3 + $0x4]]
    %s36 = sld [smem:[#allocation3 + $0x5]]
    %s37 = sld [smem:[#allocation3 + $0x6]]
    %s38 = sld [smem:[#allocation4]]
    %s39 = sld [smem:[#allocation4 + $0x1]]
    %s40 = sld [smem:[#allocation4 + $0x2]]
    %s41 = sld [smem:[#allocation4 + $0x3]]
    %s42 = sld [smem:[#allocation4 + $0x4]]
    %s43 = sld [smem:[#allocation4 + $0x5]]
    %s44 = sld [smem:[#allocation4 + $0x6]]
    %v45 = vld [vmem:[#allocation5] sm:$0xff]
    %v46 = vld [vmem:[#allocation5 + $0x8] sm:$0xff]
    %v47 = vmul.f32 %v45, 7.0
    %v48 = vmul.f32 %v46, 7.0
    %vm49 = vcmp.ge.f32.partialorder %v47, 1.0
    %vm50 = vcmp.ge.f32.partialorder %v48, 1.0
    %v51 = vstv %s32
    %v52 = vstv %s31
    %v53 = vsel %vm49, %v51, %v52
    %v54 = vsel %vm50, %v51, %v52
    %v55 = vstv %s39
    %v56 = vstv %s38
    %v57 = vsel %vm49, %v55, %v56
    %v58 = vsel %vm50, %v55, %v56
    %vm59 = vcmp.ge.f32.partialorder %v47, 2.0
    %vm60 = vcmp.ge.f32.partialorder %v48, 2.0
    %v61 = vstv %s33
    %v62 = vsel %vm59, %v61, %v53
    %v63 = vsel %vm60, %v61, %v54
    %v64 = vstv %s40
    %v65 = vsel %vm59, %v64, %v57
    %v66 = vsel %vm60, %v64, %v58
    %vm67 = vcmp.ge.f32.partialorder %v47, 3.0
    %vm68 = vcmp.ge.f32.partialorder %v48, 3.0
    %v69 = vstv %s34
    %v70 = vsel %vm67, %v69, %v62
    %v71 = vsel %vm68, %v69, %v63
    %v72 = vstv %s41
    %v73 = vsel %vm67, %v72, %v65
    %v74 = vsel %vm68, %v72, %v66
    %vm75 = vcmp.ge.f32.partialorder %v47, 4.0
    %vm76 = vcmp.ge.f32.partialorder %v48, 4.0
    %v77 = vstv %s35
    %v78 = vsel %vm75, %v77, %v70
    %v79 = vsel %vm76, %v77, %v71
    %v80 = vstv %s42
    %v81 = vsel %vm75, %v80, %v73
    %v82 = vsel %vm76, %v80, %v74
    %vm83 = vcmp.ge.f32.partialorder %v47, 5.0
    %vm84 = vcmp.ge.f32.partialorder %v48, 5.0
    %v85 = vstv %s36
    %v86 = vsel %vm83, %v85, %v78
    %v87 = vsel %vm84, %v85, %v79
    %v88 = vstv %s43
    %v89 = vsel %vm83, %v88, %v81
    %v90 = vsel %vm84, %v88, %v82
    %vm91 = vcmp.ge.f32.partialorder %v47, 6.0
    %vm92 = vcmp.ge.f32.partialorder %v48, 6.0
    %v93 = vstv %s37
    %v94 = vsel %vm91, %v93, %v86
    %v95 = vsel %vm92, %v93, %v87
    %v96 = vstv %s44
    %v97 = vsel %vm91, %v96, %v89
    %v98 = vsel %vm92, %v96, %v90
    %v99 = vmul.f32 %v94, %v47
    %v100 = vmul.f32 %v95, %v48
    %v101 = vadd.f32 %v99, %v97
    %v102 = vadd.f32 %v100, %v98
    %103 = vst [vmem:[#allocation8] sm:$0xff] %v101
    %104 = vst [vmem:[#allocation8 + $0x8] sm:$0xff] %v102
    // Predicated region
    $region10: #{tpu_custom_call.1} parent=1 // pred_check
      _
    $region11: #{tpu_custom_call.1} parent=1 // pred_check_branch
      %106 = sbr.rel (0) target = $region13
    $region12: #{tpu_custom_call.1} parent=1 // pred_region
      %s108 = ssub.s32 256, 256
      %109 = vsyncadd [#allocation7], %s108
      %s111 = sshll.u32 [#allocation8], 4
      %s112 = int_to_ptr.vmem [resolvable:$true] %s111
      %114 = dma.vmem_to_hbm [thread:$0]  %s112, 256, %s3, [#allocation7]
    $region13: #{tpu_custom_call.1} parent=1 // pred_fallthru
      _
    // Predicated region
    $region14: #{tpu_custom_call.1} parent=1 // pred_check
      _
    $region15: #{tpu_custom_call.1} parent=1 // pred_check_branch
      %116 = sbr.rel (0) target = $region17
    $region16: #{tpu_custom_call.1} parent=1 // pred_region
      %117 = dma.done [#allocation7], 256
    $region17: #{tpu_custom_call.1} parent=1 // pred_fallthru
      _
    %118 = vsyncpa [#allocation6], 1
    %119 = vsyncpa [#allocation7], 1

</llo_original>
